<compile_context>
chip_gen: v6e
topology: v6e:2x2x1
jax: 0.10.0
libtpu: 0.0.40
codegen_flags: <defaults>
</compile_context>

<pallas_src>
import functools

import jax
import jax.numpy as jnp
import numpy as np
from jax.experimental import pallas as pl
from jax.experimental.pallas import tpu as pltpu

_BN_EPS = 1e-5


def _round_up(a, b):
    return (a + b - 1) // b * b


def _vmem_budget_bytes():
    """Generation-conditional VMEM budget (v7x has 64 MiB physical, v5e/v6e 128 MiB)."""
    cap = 64 * 1024 * 1024  # conservative default (v7x)
    try:
        info = pltpu.get_tpu_info()
        cap = int(getattr(info, "vmem_capacity_bytes", cap))
    except Exception:
        pass
    return min(cap * 3 // 4, 100 * 1024 * 1024)


_VMEM_BUDGET = _vmem_budget_bytes()


# --------------------------------------------------------------------------------------
# Fused path: one pallas_call, grid over N tiles only.
# --------------------------------------------------------------------------------------
def _fused_kernel(x_ref, w_ref, g_ref, b_ref, o_ref, *, tm, m_true, eps):
    """x_ref: (m_pad, K) f32 (resident), w_ref: (K, tn) bf16, g/b_ref: (1, tn) f32,
    o_ref: (m_pad, tn) f32 (doubles as the y scratch between the two passes)."""
    m_pad, tn = o_ref.shape
    m_tiles = m_pad // tm
    unroll = m_tiles <= 4
    w = w_ref[...]  # (K, tn) bf16, hoisted out of the loops

    # ---- pass A: matmul into the output buffer + f32 column sums (XLU, full precision) ----
    def pass_a(i, carry):
        s, sq = carry
        r0 = pl.multiple_of(i * tm, tm)
        xa = x_ref[pl.ds(r0, tm), :].astype(jnp.bfloat16)          # in-kernel bf16 cast
        y = jnp.dot(xa, w, preferred_element_type=jnp.float32)      # MXU, f32 accumulate
        o_ref[pl.ds(r0, tm), :] = y                                  # stash y in the out buffer
        return (s + jnp.sum(y, axis=0, keepdims=True),
                sq + jnp.sum(y * y, axis=0, keepdims=True))

    zeros = jnp.zeros((1, tn), jnp.float32)
    s, sq = jax.lax.fori_loop(0, m_tiles, pass_a, (zeros, zeros), unroll=unroll)

    # ---- BN finalize, hoisted: once per channel tile ----
    inv_m = 1.0 / m_true
    mean = s * inv_m
    var = jnp.maximum(sq * inv_m - mean * mean, 0.0)   # biased variance (PyTorch normalization)
    scale = g_ref[...] * jax.lax.rsqrt(var + eps)       # (1, tn)
    shift = b_ref[...] - mean * scale                   # (1, tn)

    # ---- pass B: normalize + ReLU in place ----
    def pass_b(i, _):
        r0 = pl.multiple_of(i * tm, tm)
        y = o_ref[pl.ds(r0, tm), :]
        o_ref[pl.ds(r0, tm), :] = jnp.maximum(y * scale + shift, 0.0).astype(o_ref.dtype)
        return 0

    jax.lax.fori_loop(0, m_tiles, pass_b, 0, unroll=unroll)


# --------------------------------------------------------------------------------------
# Fallback two-phase path (only for very large M*tn panels that don't fit VMEM).
# --------------------------------------------------------------------------------------
def _matmul_stats_kernel(x_ref, w_ref, y_ref, psum_ref, psumsq_ref):
    """y (bf16) = x @ w plus per-(M-tile, channel) partial sum / sum-of-squares (f32, XLU)."""
    y = jnp.dot(x_ref[...].astype(jnp.bfloat16), w_ref[...],
                preferred_element_type=jnp.float32)
    y_ref[...] = y.astype(y_ref.dtype)                               # bf16 store: halves y traffic
    psum_ref[...] = jnp.sum(y, axis=0, keepdims=True)[None]
    psumsq_ref[...] = jnp.sum(y * y, axis=0, keepdims=True)[None]


def _bn_relu_kernel(y_ref, scale_ref, shift_ref, o_ref):
    """Pure streaming epilogue: o = relu(y * scale + shift)."""
    y = y_ref[...].astype(jnp.float32)
    o_ref[...] = jnp.maximum(y * scale_ref[...] + shift_ref[...], 0.0).astype(o_ref.dtype)


def _twophase_forward(x2d, w_p, g2d, b2d, m, m_pad, c_pad, k, tm, tn, budget):
    m_tiles = m_pad // tm
    n_tiles = c_pad // tn
    cparams = pltpu.CompilerParams(
        dimension_semantics=("parallel", "parallel"),
        vmem_limit_bytes=budget,
    )

    # Phase 1: grid (m_tiles, n_tiles), N innermost -> each x row tile is DMA'd once.
    y_bf16, psum, psumsq = pl.pallas_call(
        _matmul_stats_kernel,
        out_shape=(
            jax.ShapeDtypeStruct((m_pad, c_pad), jnp.bfloat16),
            jax.ShapeDtypeStruct((m_tiles, 1, c_pad), jnp.float32),
            jax.ShapeDtypeStruct((m_tiles, 1, c_pad), jnp.float32),
        ),
        grid_spec=pltpu.PrefetchScalarGridSpec(
            num_scalar_prefetch=0,
            grid=(m_tiles, n_tiles),
            in_specs=[
                pl.BlockSpec((tm, k), lambda i, j: (i, 0)),
                pl.BlockSpec((k, tn), lambda i, j: (0, j)),
            ],
            out_specs=[
                pl.BlockSpec((tm, tn), lambda i, j: (i, j)),
                pl.BlockSpec((1, 1, tn), lambda i, j: (i, 0, j)),
                pl.BlockSpec((1, 1, tn), lambda i, j: (i, 0, j)),
            ],
        ),
        compiler_params=cparams,
    )(x2d, w_p)

    # Hoisted BN finalize (tiny plain-JAX op): (1, c_pad) scale / shift.
    inv_m = 1.0 / m
    s = jnp.sum(psum[:, 0, :], axis=0)
    sq = jnp.sum(psumsq[:, 0, :], axis=0)
    mean = s * inv_m
    var = jnp.maximum(sq * inv_m - mean * mean, 0.0)
    scale = (g2d[0] * jax.lax.rsqrt(var + _BN_EPS)).reshape(1, c_pad)
    shift = (b2d[0] - mean * scale[0]).reshape(1, c_pad)

    # Phase 2: streaming epilogue.
    # TODO(synk): cannot input_output_alias y (bf16) onto the f32 output; if the consumer
    #             accepted bf16 output both could be bf16 and aliased.
    out_pad = pl.pallas_call(
        _bn_relu_kernel,
        out_shape=jax.ShapeDtypeStruct((m_pad, c_pad), jnp.float32),
        grid_spec=pltpu.PrefetchScalarGridSpec(
            num_scalar_prefetch=0,
            grid=(m_tiles, n_tiles),
            in_specs=[
                pl.BlockSpec((tm, tn), lambda i, j: (i, j)),
                pl.BlockSpec((1, tn), lambda i, j: (0, j)),
                pl.BlockSpec((1, tn), lambda i, j: (0, j)),
            ],
            out_specs=pl.BlockSpec((tm, tn), lambda i, j: (i, j)),
        ),
        compiler_params=cparams,
    )(y_bf16, scale, shift)
    return out_pad


# --------------------------------------------------------------------------------------
# Public forward.
# --------------------------------------------------------------------------------------
@jax.jit
def linear_layer_forward(x, w_t, bias, gamma, beta):
    """LinearLayer forward: x (*, C_in) -> (*, C_out).  w_t is (C_in, C_out).

    `bias` is accepted for API parity with nn.Linear but is unused: training-mode BatchNorm's
    per-channel mean subtraction cancels it exactly.
    """
    del bias  # algebraically cancelled by BN

    lead_shape = x.shape[:-1]
    k = x.shape[-1]
    c_out = w_t.shape[-1]
    m = int(np.prod(lead_shape)) if lead_shape else 1

    budget = _VMEM_BUDGET
    big_part = budget >= 80 * 1024 * 1024          # 128-MiB VMEM generations (v5e/v6e)

    # ---- tile selection (lane/sublane dense; generation-conditional sizes) ----
    c_pad = _round_up(c_out, 128)
    if big_part and c_pad % 512 == 0:
        tn = 512
    elif c_pad % 256 == 0:
        tn = 256
    else:
        tn = 128
    n_tiles = c_pad // tn

    tm_cap = 512 if big_part else 256
    tm = tm_cap if m >= tm_cap else _round_up(m, 8)
    m_pad = _round_up(m, tm)

    # ---- inputs: pad only what actually needs padding, cast x in-kernel ----
    x2d = x.reshape(m, k).astype(jnp.float32)
    if m_pad != m:
        # Zero rows contribute exactly 0 to sum/sumsq (no bias added) -> stats-neutral.
        x2d = jnp.pad(x2d, ((0, m_pad - m), (0, 0)))

    if c_pad != c_out:
        w_p = jnp.pad(w_t, ((0, 0), (0, c_pad - c_out)))
        g2d = jnp.pad(gamma.astype(jnp.float32).reshape(1, c_out), ((0, 0), (0, c_pad - c_out)))
        b2d = jnp.pad(beta.astype(jnp.float32).reshape(1, c_out), ((0, 0), (0, c_pad - c_out)))
    else:
        w_p = w_t
        g2d = gamma.astype(jnp.float32).reshape(1, c_out)
        b2d = beta.astype(jnp.float32).reshape(1, c_out)
    w_p = w_p.astype(jnp.bfloat16)

    # ---- fused-path VMEM footprint (worst case: everything double-buffered) ----
    fused_vmem = (2 * m_pad * k * 4        # resident x panel (f32)
                  + 2 * m_pad * tn * 4     # output / y panel (f32)
                  + 2 * k * tn * 2         # bf16 weight tile
                  + 4 * tn * 4 * 2)        # gamma / beta
    use_fused = fused_vmem <= budget

    if use_fused:
        out_pad = pl.pallas_call(
            functools.partial(_fused_kernel, tm=tm, m_true=float(m), eps=_BN_EPS),
            out_shape=jax.ShapeDtypeStruct((m_pad, c_pad), jnp.float32),
            grid_spec=pltpu.PrefetchScalarGridSpec(
                num_scalar_prefetch=0,
                grid=(n_tiles,),
                in_specs=[
                    pl.BlockSpec((m_pad, k), lambda j: (0, 0)),   # x: resident, DMA'd once
                    pl.BlockSpec((k, tn), lambda j: (0, j)),      # weight column panel (bf16)
                    pl.BlockSpec((1, tn), lambda j: (0, j)),      # gamma
                    pl.BlockSpec((1, tn), lambda j: (0, j)),      # beta
                ],
                out_specs=pl.BlockSpec((m_pad, tn), lambda j: (0, j)),
            ),
            compiler_params=pltpu.CompilerParams(
                dimension_semantics=("parallel",),
                vmem_limit_bytes=budget,
            ),
        )(x2d, w_p, g2d, b2d)
    else:
        out_pad = _twophase_forward(x2d, w_p, g2d, b2d, float(m), m_pad, c_pad, k, tm, tn, budget)

    return out_pad[:m, :c_out].reshape(*lead_shape, c_out)


def _reference(x, w_t, bias, gamma, beta):
    # Mirrors the kernel's bf16 MXU inputs / f32 accumulation so the check is tight.
    x2d = x.reshape(-1, x.shape[-1]).astype(jnp.bfloat16)
    y = jnp.dot(x2d, w_t.astype(jnp.bfloat16), preferred_element_type=jnp.float32) + bias
    mean = y.mean(axis=0)
    var = y.var(axis=0)  # biased, as PyTorch BN uses for normalization
    y_hat = (y - mean) * jax.lax.rsqrt(var + _BN_EPS)
    out = jnp.maximum(gamma * y_hat + beta, 0.0)
    return out.reshape(*x.shape[:-1], w_t.shape[-1])


if __name__ == "__main__":
    key = jax.random.PRNGKey(0)
    k_x, k_w, k_b, k_g, k_be = jax.random.split(key, 5)

    batch, seq, in_features, out_features = 2, 8, 32, 32  # 3-D (*, C) case of the module

    x = jax.random.normal(k_x, (batch, seq, in_features), dtype=jnp.float32)

    # Deterministic parameter init (mimics nn.Linear's uniform fan-in scaling).
    bound = 1.0 / np.sqrt(in_features)
    w_t = jax.random.uniform(k_w, (in_features, out_features),
                             minval=-bound, maxval=bound, dtype=jnp.float32)
    bias = jax.random.uniform(k_b, (out_features,),
                              minval=-bound, maxval=bound, dtype=jnp.float32)
    gamma = 1.0 + 0.1 * jax.random.normal(k_g, (out_features,), dtype=jnp.float32)
    beta = 0.1 * jax.random.normal(k_be, (out_features,), dtype=jnp.float32)

    out = jax.block_until_ready(linear_layer_forward(x, w_t, bias, gamma, beta))

    ref = _reference(x, w_t, bias, gamma, beta)
    np.testing.assert_allclose(np.asarray(out), np.asarray(ref), atol=5e-4, rtol=5e-4)

    print("KERNEL_OK")
</pallas_src>

<mosaic_0001>
module attributes {stable_mosaic.version = 11 : i64} {
  func.func @_fused_kernel(%arg0: i32, %arg1: memref<16x32xf32, #tpu.memory_space<vmem>>, %arg2: memref<32x128xbf16, #tpu.memory_space<vmem>>, %arg3: memref<1x128xf32, #tpu.memory_space<vmem>>, %arg4: memref<1x128xf32, #tpu.memory_space<vmem>>, %arg5: memref<16x128xf32, #tpu.memory_space<vmem>>) attributes {dimension_semantics = [#tpu.dimension_semantics<parallel>], iteration_bounds = array<i64: 1>, scalar_prefetch = 0 : i64, scratch_operands = 0 : i64, tpu.core_type = #tpu.core_type<tc>, window_params = [{pipeline_mode = #tpu.pipeline_mode<synchronous>, transform_indices = @transform_0, window_bounds = array<i64: 16, 32>}, {transform_indices = @transform_1, window_bounds = array<i64: 32, 128>}, {transform_indices = @transform_2, window_bounds = array<i64: 1, 128>}, {transform_indices = @transform_3, window_bounds = array<i64: 1, 128>}, {transform_indices = @transform_4, window_bounds = array<i64: 16, 128>}]} {
    %c0 = arith.constant 0 : index
    %c0_0 = arith.constant 0 : index
    %0 = vector.load %arg2[%c0, %c0_0] : memref<32x128xbf16, #tpu.memory_space<vmem>>, vector<32x128xbf16>
    %cst = arith.constant 0.000000e+00 : f32
    %1 = vector.broadcast %cst : f32 to vector<1x128xf32>
    %c0_i32 = arith.constant 0 : i32
    %c16_i32 = arith.constant 16 : i32
    %2 = arith.muli %c0_i32, %c16_i32 : i32
    %3 = tpu.assume_multiple %2, 16 : i32
    %4 = arith.index_cast %3 : i32 to index
    %c0_1 = arith.constant 0 : index
    %5 = vector.load %arg1[%4, %c0_1] : memref<16x32xf32, #tpu.memory_space<vmem>>, vector<16x32xf32>
    %6 = arith.truncf %5 : vector<16x32xf32> to vector<16x32xbf16>
    %cst_2 = arith.constant dense<0.000000e+00> : vector<16x128xf32>
    %7 = tpu.matmul %6, %0, %cst_2 {dimension_numbers = #tpu.dot_dimension_numbers<[1], [0], [0], [1], [0, 0, 1, 1], [], []>} : vector<16x32xbf16>, vector<32x128xbf16>, vector<16x128xf32> -> vector<16x128xf32>
    %8 = arith.index_cast %3 : i32 to index
    %c0_3 = arith.constant 0 : index
    %9 = vector.load %arg5[%8, %c0_3] : memref<16x128xf32, #tpu.memory_space<vmem>>, vector<16x128xf32>
    tpu.vector_store %arg5[%8, %c0_3], %7 {strides = array<i32>} : memref<16x128xf32, #tpu.memory_space<vmem>>, vector<16x128xf32>,
    %cst_4 = arith.constant dense<0.000000e+00> : vector<128xf32>
    %10 = vector.multi_reduction <add>, %7, %cst_4 [0] : vector<16x128xf32> to vector<128xf32>
    %11 = vector.shape_cast %10 : vector<128xf32> to vector<1x128xf32>
    %12 = arith.addf %1, %11 : vector<1x128xf32>
    %13 = arith.mulf %7, %7 : vector<16x128xf32>
    %cst_5 = arith.constant dense<0.000000e+00> : vector<128xf32>
    %14 = vector.multi_reduction <add>, %13, %cst_5 [0] : vector<16x128xf32> to vector<128xf32>
    %15 = vector.shape_cast %14 : vector<128xf32> to vector<1x128xf32>
    %16 = arith.addf %1, %15 : vector<1x128xf32>
    %c1_i32 = arith.constant 1 : i32
    %cst_6 = arith.constant 6.250000e-02 : f32
    %17 = vector.broadcast %cst_6 : f32 to vector<1x128xf32>
    %18 = arith.mulf %12, %17 : vector<1x128xf32>
    %cst_7 = arith.constant 6.250000e-02 : f32
    %19 = vector.broadcast %cst_7 : f32 to vector<1x128xf32>
    %20 = arith.mulf %16, %19 : vector<1x128xf32>
    %21 = arith.mulf %18, %18 : vector<1x128xf32>
    %22 = arith.subf %20, %21 : vector<1x128xf32>
    %cst_8 = arith.constant 0.000000e+00 : f32
    %23 = vector.broadcast %cst_8 : f32 to vector<1x128xf32>
    %24 = arith.maximumf %22, %23 : vector<1x128xf32>
    %c0_9 = arith.constant 0 : index
    %c0_10 = arith.constant 0 : index
    %25 = vector.load %arg3[%c0_9, %c0_10] : memref<1x128xf32, #tpu.memory_space<vmem>>, vector<1x128xf32>
    %cst_11 = arith.constant 9.99999974E-6 : f32
    %26 = vector.broadcast %cst_11 : f32 to vector<1x128xf32>
    %27 = arith.addf %24, %26 : vector<1x128xf32>
    %28 = math.rsqrt %27 : vector<1x128xf32>
    %29 = arith.mulf %25, %28 : vector<1x128xf32>
    %c0_12 = arith.constant 0 : index
    %c0_13 = arith.constant 0 : index
    %30 = vector.load %arg4[%c0_12, %c0_13] : memref<1x128xf32, #tpu.memory_space<vmem>>, vector<1x128xf32>
    %31 = arith.mulf %18, %29 : vector<1x128xf32>
    %32 = arith.subf %30, %31 : vector<1x128xf32>
    %c0_i32_14 = arith.constant 0 : i32
    %c16_i32_15 = arith.constant 16 : i32
    %33 = arith.muli %c0_i32_14, %c16_i32_15 : i32
    %34 = tpu.assume_multiple %33, 16 : i32
    %35 = arith.index_cast %34 : i32 to index
    %c0_16 = arith.constant 0 : index
    %36 = vector.load %arg5[%35, %c0_16] : memref<16x128xf32, #tpu.memory_space<vmem>>, vector<16x128xf32>
    %37 = vector.broadcast %29 : vector<1x128xf32> to vector<16x128xf32>
    %38 = arith.mulf %36, %37 : vector<16x128xf32>
    %39 = vector.broadcast %32 : vector<1x128xf32> to vector<16x128xf32>
    %40 = arith.addf %38, %39 : vector<16x128xf32>
    %cst_17 = arith.constant 0.000000e+00 : f32
    %41 = vector.broadcast %cst_17 : f32 to vector<16x128xf32>
    %42 = arith.maximumf %40, %41 : vector<16x128xf32>
    %43 = arith.index_cast %34 : i32 to index
    %c0_18 = arith.constant 0 : index
    %44 = vector.load %arg5[%43, %c0_18] : memref<16x128xf32, #tpu.memory_space<vmem>>, vector<16x128xf32>
    tpu.vector_store %arg5[%43, %c0_18], %42 {strides = array<i32>} : memref<16x128xf32, #tpu.memory_space<vmem>>, vector<16x128xf32>,
    %c1_i32_19 = arith.constant 1 : i32
    return
  }
  func.func @transform_0(%arg0: i32) -> (i32, i32) {
    %c0_i32 = arith.constant 0 : i32
    %c0_i32_0 = arith.constant 0 : i32
    %c0_i32_1 = arith.constant 0 : i32
    return %c0_i32, %c0_i32_0 : i32, i32
  }
  func.func @transform_1(%arg0: i32) -> (i32, i32) {
    %c0_i32 = arith.constant 0 : i32
    %c0_i32_0 = arith.constant 0 : i32
    return %c0_i32, %arg0 : i32, i32
  }
  func.func @transform_2(%arg0: i32) -> (i32, i32) {
    %c0_i32 = arith.constant 0 : i32
    %c0_i32_0 = arith.constant 0 : i32
    return %c0_i32, %arg0 : i32, i32
  }
  func.func @transform_3(%arg0: i32) -> (i32, i32) {
    %c0_i32 = arith.constant 0 : i32
    %c0_i32_0 = arith.constant 0 : i32
    return %c0_i32, %arg0 : i32, i32
  }
  func.func @transform_4(%arg0: i32) -> (i32, i32) {
    %c0_i32 = arith.constant 0 : i32
    %c0_i32_0 = arith.constant 0 : i32
    return %c0_i32, %arg0 : i32, i32
  }
}

</mosaic_0001>

<llo_original>
// kernel: linear_layer_forward.1
$region0: #{linear_layer_forward.1}
  #allocation0 [shape = 'u32[]', space=smem, size = 0x4, offset = 0x4, fixed_abs, tag = 'smem constant byte address 0x4 - core index']
  #allocation1 [shape = 'u32[144,128]{1,0:T(1,128)}', space=vmem, size = 0x12000, scoped, tag = 'internal scratch']
  %s0 = inlined_call_operand.vmem [shape: f32[16,32], index: 0, kind: input, shape index: {}]
  %s1 = inlined_call_operand.vmem [shape: bf16[32,128], index: 1, kind: input, shape index: {}]
  %s2 = inlined_call_operand.vmem [shape: f32[1,128], index: 2, kind: input, shape index: {}]
  %s3 = inlined_call_operand.vmem [shape: f32[1,128], index: 3, kind: input, shape index: {}]
  %s4 = inlined_call_operand.vmem [shape: f32[16,128], index: 4, kind: output, shape index: {}]
  %s5 = sld [smem:[#allocation0]]
  $region26: #{linear_layer_forward.1} parent=0
    _
  %s7 = ssub.s32 1, %s5
  %s8 = scalar_select 0, %s7, %s5
  // Predicated region
  $region2: #{linear_layer_forward.1} parent=0 // pred_check
    _
  $region3: #{linear_layer_forward.1} parent=0 // pred_check_branch
    %10 = sbr.rel (0) target = $region5
  $region4: #{linear_layer_forward.1} parent=0 // pred_region
    _
  $region5: #{linear_layer_forward.1} parent=0 // pred_fallthru
    _
  // Predicated region
  $region6: #{linear_layer_forward.1} parent=0 // pred_check
    _
  $region7: #{linear_layer_forward.1} parent=0 // pred_check_branch
    %12 = sbr.rel (0) target = $region9
  $region8: #{linear_layer_forward.1} parent=0 // pred_region
    _
  $region9: #{linear_layer_forward.1} parent=0 // pred_fallthru
    _
  // Predicated region
  $region10: #{linear_layer_forward.1} parent=0 // pred_check
    _
  $region11: #{linear_layer_forward.1} parent=0 // pred_check_branch
    %14 = sbr.rel (0) target = $region13
  $region12: #{linear_layer_forward.1} parent=0 // pred_region
    _
  $region13: #{linear_layer_forward.1} parent=0 // pred_fallthru
    _
  // Predicated region
  $region14: #{linear_layer_forward.1} parent=0 // pred_check
    _
  $region15: #{linear_layer_forward.1} parent=0 // pred_check_branch
    %16 = sbr.rel (0) target = $region17
  $region16: #{linear_layer_forward.1} parent=0 // pred_region
    _
  $region17: #{linear_layer_forward.1} parent=0 // pred_fallthru
    _
  %v18 = vld [vmem:[%s1] sm:$0xf]
  %v19 = vld [vmem:[%s1 + $0x4] sm:$0xf]
  %v20 = vld [vmem:[%s1 + $0x8] sm:$0xf]
  %v21 = vld [vmem:[%s1 + $0xc] sm:$0xf]
  %v22 = vld [vmem:[%s0] sm:$0xff]
  %v23 = vld [vmem:[%s0 + $0x8] sm:$0xff]
  %v24 = vpack.c.bf16 %v23, %v22
  %v29 = vunpack.c.l.b16 %v18
  %v30 = vunpack.c.l.b16 %v19
  %v31 = vunpack.c.l.b16 %v20
  %v32 = vunpack.c.l.b16 %v21
  %v33 = vpack.c.b16 %v30, %v29
  %v34 = vpack.c.b16 %v32, %v31
  %vm37 = vcmask 261120
  %v39 = vsel %vm37, %v24, 0
  %41 = vmatprep.subr.bf16.mxu0 0
  %42 = vmatpush1.bf16.msra.mxu0 0
  %43 = vmatprep.subr.bf16.mxu0 0
  %44 = vmatpush1.bf16.msra.mxu0 0
  %45 = vmatprep.subr.bf16.mxu0 0
  %46 = vmatpush1.bf16.msra.mxu0 0
  %47 = vmatprep.subr.bf16.mxu0 0
  %48 = vmatpush1.bf16.msra.mxu0 0
  %49 = vmatprep.subr.bf16.mxu0 0
  %50 = vmatpush1.bf16.msra.mxu0 0
  %51 = vmatprep.subr.bf16.mxu0 0
  %52 = vmatpush1.bf16.msra.mxu0 0
  %53 = vmatprep.subr.bf16.mxu0 0
  %54 = vmatpush1.bf16.msra.mxu0 %v34
  %55 = vmatprep.subr.bf16.mxu0 0
  %56 = vmatpush1.bf16.msra.mxu0 %v33
  %57 = vmatprep.subr.bf16.mxu0 0
  %58 = vmatpush2.bf16.msra.mxu0 0
  %59 = vmatprep.subr.bf16.mxu0 0
  %60 = vmatpush2.bf16.msra.mxu0 0
  %61 = vmatprep.subr.bf16.mxu0 0
  %62 = vmatpush2.bf16.msra.mxu0 0
  %63 = vmatprep.subr.bf16.mxu0 0
  %64 = vmatpush2.bf16.msra.mxu0 0
  %65 = vmatprep.subr.bf16.mxu0 0
  %66 = vmatpush2.bf16.msra.mxu0 0
  %67 = vmatprep.subr.bf16.mxu0 0
  %68 = vmatpush2.bf16.msra.mxu0 0
  %69 = vmatprep.subr.bf16.mxu0 0
  %70 = vmatpush2.bf16.msra.mxu0 0
  %71 = vmatprep.subr.bf16.mxu0 0
  %72 = vmatpush2.bf16.msra.mxu0 0
  %73 = vmatprep.mubr.bf16.mxu0 0
  %74 = vmatmul.mubr.bf16.gmra.mxu0 %v39
  %v75 = vpop.f32.mrf.mxu0
  %v76 = vadd.f32 0.0, %v75
  %v77 = vpop.f32.mrf.mxu0
  %v78 = vpop.f32.mrf.mxu0
  %v79 = vadd.f32 0.0, %v78
  %v80 = vpop.f32.mrf.mxu0
  %81 = vdwg.mxu0
  %82 = vst [vmem:[%s4] sm:$0xff] %v76
  %83 = vst [vmem:[%s4 + $0x8] sm:$0xff] %v79
  %v84 = vadd.f32 %v76, %v79
  %v85 = vrot.slane %v84, 4
  %v86 = vadd.f32 %v84, %v85
  %v87 = vrot.slane %v86, 2
  %v88 = vadd.f32 %v86, %v87
  %v89 = vrot.slane %v88, 1
  %v90 = vadd.f32 %v88, %v89
  %v91 = vadd.f32 %v90, 0.0
  %v92 = vmul.f32 %v76, %v76
  %v93 = vmul.f32 %v79, %v79
  %v94 = vadd.f32 %v92, %v93
  %v95 = vrot.slane %v94, 4
  %v96 = vadd.f32 %v94, %v95
  %v97 = vrot.slane %v96, 2
  %v98 = vadd.f32 %v96, %v97
  %v99 = vrot.slane %v98, 1
  %v100 = vadd.f32 %v98, %v99
  %v101 = vadd.f32 %v100, 0.0
  %v102 = vmul.f32 %v91, 0.0625
  %v103 = vmul.f32 %v101, 0.0625
  %v104 = vmul.f32 %v102, %v102
  %v105 = vsub.f32 %v103, %v104
  %v106 = vmax.f32 %v105, 0.0
  %v107 = vld [vmem:[%s2] sm:$0x1]
  %v108 = vadd.f32 %v106, 1e-05
  %v109 = vrsqrt.pop %v108
  %v110 = vmul.f32 %v107, %v109
  %v111 = vld [vmem:[%s3] sm:$0x1]
  %v112 = vmul.f32 %v102, %v110
  %v113 = vsub.f32 %v111, %v112
  %v114 = vld [vmem:[%s4] sm:$0xff]
  %v115 = vld [vmem:[%s4 + $0x8] sm:$0xff]
  %v117 = vlaneseq
  %v118 = vshrl.u32 %v117, 7
  %v119 = vsub.s32 0, %v118
  %v120 = vrot.slane %v110, %v119
  %v122 = vmul.f32 %v114, %v120
  %v123 = vmul.f32 %v115, %v120
  %v125 = vlaneseq
  %v126 = vshrl.u32 %v125, 7
  %v127 = vsub.s32 0, %v126
  %v128 = vrot.slane %v113, %v127
  %v130 = vadd.f32 %v122, %v128
  %v131 = vadd.f32 %v123, %v128
  %v132 = vmax.f32 %v130, 0.0
  %v133 = vmax.f32 %v131, 0.0
  %134 = vst [vmem:[%s4] sm:$0xff] %v132
  %135 = vst [vmem:[%s4 + $0x8] sm:$0xff] %v133
  // Predicated region
  $region18: #{linear_layer_forward.1} parent=0 // pred_check
    _
  $region19: #{linear_layer_forward.1} parent=0 // pred_check_branch
    %137 = sbr.rel (0) target = $region21
  $region20: #{linear_layer_forward.1} parent=0 // pred_region
    _
  $region21: #{linear_layer_forward.1} parent=0 // pred_fallthru
    _
  // Predicated region
  $region22: #{linear_layer_forward.1} parent=0 // pred_check
    _
  $region23: #{linear_layer_forward.1} parent=0 // pred_check_branch
    %139 = sbr.rel (0) target = $region25
  $region24: #{linear_layer_forward.1} parent=0 // pred_region
    _
  $region25: #{linear_layer_forward.1} parent=0 // pred_fallthru
    _

</llo_original>
